<compile_context>
chip_gen: v5e
topology: v5e:2x2
jax: 0.10.0
libtpu: 0.0.40
codegen_flags: <defaults>
</compile_context>

<pallas_src>
import jax
import jax.numpy as jnp
from jax.experimental import pallas as pl
from jax.experimental.pallas import tpu as pltpu

LANE = 128            # vreg lane width; last dim multiple of 128 -> unmasked vst
SUBLANE = 8           # f32 sublane granularity
MAX_BLOCK_ROWS = 1024  # 1024 x 128 f32 = 512 KiB per operand per grid step


def add_kernel(a_ref, b_ref, o_ref):
    o_ref[...] = a_ref[...] + b_ref[...]


def additional_layer_forward(I, mul_output):
    """Pallas equivalent of AdditionalLayer.forward: torch.add(I, mul_output)."""
    out_shape = jnp.broadcast_shapes(I.shape, mul_output.shape)
    out_dtype = jnp.result_type(I.dtype, mul_output.dtype)
    a = jnp.broadcast_to(I, out_shape).astype(out_dtype).reshape(-1)
    b = jnp.broadcast_to(mul_output, out_shape).astype(out_dtype).reshape(-1)

    n = a.size
    # Lane-dense 2-D layout: (rows, 128), rows padded to sublane/block multiples.
    rows = pl.cdiv(n, LANE)
    rows = pl.cdiv(rows, SUBLANE) * SUBLANE
    block_rows = min(MAX_BLOCK_ROWS, rows)
    rows = pl.cdiv(rows, block_rows) * block_rows
    total = rows * LANE
    if total != n:
        a = jnp.pad(a, (0, total - n))
        b = jnp.pad(b, (0, total - n))
    a2 = a.reshape(rows, LANE)
    b2 = b.reshape(rows, LANE)

    spec = pl.BlockSpec((block_rows, LANE), lambda i: (i, 0))
    out = pl.pallas_call(
        add_kernel,
        grid=(rows // block_rows,),
        in_specs=[spec, spec],
        out_specs=spec,
        out_shape=jax.ShapeDtypeStruct((rows, LANE), out_dtype),
        compiler_params=pltpu.CompilerParams(
            dimension_semantics=("parallel",)),
    )(a2, b2)
    return out.reshape(-1)[:n].reshape(out_shape)


if __name__ == "__main__":
    key = jax.random.PRNGKey(0)
    k1, k2 = jax.random.split(key)
    # Shapes consistent with the module: two same-shaped activation tensors.
    I = jax.random.normal(k1, (2, 4, 16, 16), jnp.float32)
    mul_output = jax.random.normal(k2, (2, 4, 16, 16), jnp.float32)

    fwd = jax.jit(additional_layer_forward)
    out = fwd(I, mul_output)
    jax.block_until_ready(out)

    ref = I + mul_output
    assert out.shape == ref.shape
    assert out.dtype == ref.dtype
    assert bool(jnp.allclose(out, ref, rtol=1e-6, atol=1e-6))
    assert bool(jnp.all(jnp.isfinite(out)))
    print("KERNEL_OK")
</pallas_src>

<mosaic_0001>
module attributes {stable_mosaic.version = 11 : i64} {
  func.func @add_kernel(%arg0: i32, %arg1: memref<16x128xf32, #tpu.memory_space<vmem>>, %arg2: memref<16x128xf32, #tpu.memory_space<vmem>>, %arg3: memref<16x128xf32, #tpu.memory_space<vmem>>) attributes {dimension_semantics = [#tpu.dimension_semantics<parallel>], iteration_bounds = array<i64: 1>, scalar_prefetch = 0 : i64, scratch_operands = 0 : i64, tpu.core_type = #tpu.core_type<tc>, window_params = [{transform_indices = @transform_0, window_bounds = array<i64: 16, 128>}, {transform_indices = @transform_1, window_bounds = array<i64: 16, 128>}, {transform_indices = @transform_2, window_bounds = array<i64: 16, 128>}]} {
    %c0 = arith.constant 0 : index
    %c0_0 = arith.constant 0 : index
    %0 = vector.load %arg1[%c0, %c0_0] : memref<16x128xf32, #tpu.memory_space<vmem>>, vector<16x128xf32>
    %c0_1 = arith.constant 0 : index
    %c0_2 = arith.constant 0 : index
    %1 = vector.load %arg2[%c0_1, %c0_2] : memref<16x128xf32, #tpu.memory_space<vmem>>, vector<16x128xf32>
    %2 = arith.addf %0, %1 : vector<16x128xf32>
    %c0_3 = arith.constant 0 : index
    %c0_4 = arith.constant 0 : index
    %3 = vector.load %arg3[%c0_3, %c0_4] : memref<16x128xf32, #tpu.memory_space<vmem>>, vector<16x128xf32>
    tpu.vector_store %arg3[%c0_3, %c0_4], %2 {strides = array<i32>} : memref<16x128xf32, #tpu.memory_space<vmem>>, vector<16x128xf32>,
    return
  }
  func.func @transform_0(%arg0: i32) -> (i32, i32) {
    %c0_i32 = arith.constant 0 : i32
    %c0_i32_0 = arith.constant 0 : i32
    return %arg0, %c0_i32 : i32, i32
  }
  func.func @transform_1(%arg0: i32) -> (i32, i32) {
    %c0_i32 = arith.constant 0 : i32
    %c0_i32_0 = arith.constant 0 : i32
    return %arg0, %c0_i32 : i32, i32
  }
  func.func @transform_2(%arg0: i32) -> (i32, i32) {
    %c0_i32 = arith.constant 0 : i32
    %c0_i32_0 = arith.constant 0 : i32
    return %arg0, %c0_i32 : i32, i32
  }
}

</mosaic_0001>

<llo_original>
// kernel: additional_layer_forward.1
$region0: #{additional_layer_forward.1}
  #allocation0 [shape = 'u32[]', space=smem, size = 0x4, offset = 0x4, fixed_abs, tag = 'smem constant byte address 0x4 - core index']
  #allocation1 [shape = 'u32[72,128]{1,0:T(1,128)}', space=vmem, size = 0x9000, scoped, tag = 'internal scratch']
  %s0 = inlined_call_operand.vmem [shape: f32[16,128], index: 0, kind: input, shape index: {}]
  %s1 = inlined_call_operand.vmem [shape: f32[16,128], index: 1, kind: input, shape index: {}]
  %s2 = inlined_call_operand.vmem [shape: f32[16,128], index: 2, kind: output, shape index: {}]
  %s3 = sld [smem:[#allocation0]]
  $region18: #{additional_layer_forward.1} parent=0
    _
  %s5 = ssub.s32 1, %s3
  %s6 = scalar_select 0, %s5, %s3
  // Predicated region
  $region2: #{additional_layer_forward.1} parent=0 // pred_check
    _
  $region3: #{additional_layer_forward.1} parent=0 // pred_check_branch
    %8 = sbr.rel (0) target = $region5
  $region4: #{additional_layer_forward.1} parent=0 // pred_region
    _
  $region5: #{additional_layer_forward.1} parent=0 // pred_fallthru
    _
  // Predicated region
  $region6: #{additional_layer_forward.1} parent=0 // pred_check
    _
  $region7: #{additional_layer_forward.1} parent=0 // pred_check_branch
    %10 = sbr.rel (0) target = $region9
  $region8: #{additional_layer_forward.1} parent=0 // pred_region
    _
  $region9: #{additional_layer_forward.1} parent=0 // pred_fallthru
    _
  %v11 = vld [vmem:[%s0] sm:$0xff]
  %v12 = vld [vmem:[%s0 + $0x8] sm:$0xff]
  %v13 = vld [vmem:[%s1] sm:$0xff]
  %v14 = vld [vmem:[%s1 + $0x8] sm:$0xff]
  %v15 = vadd.f32 %v11, %v13
  %v16 = vadd.f32 %v12, %v14
  %17 = vst [vmem:[%s2] sm:$0xff] %v15
  %18 = vst [vmem:[%s2 + $0x8] sm:$0xff] %v16
  // Predicated region
  $region10: #{additional_layer_forward.1} parent=0 // pred_check
    _
  $region11: #{additional_layer_forward.1} parent=0 // pred_check_branch
    %20 = sbr.rel (0) target = $region13
  $region12: #{additional_layer_forward.1} parent=0 // pred_region
    _
  $region13: #{additional_layer_forward.1} parent=0 // pred_fallthru
    _
  // Predicated region
  $region14: #{additional_layer_forward.1} parent=0 // pred_check
    _
  $region15: #{additional_layer_forward.1} parent=0 // pred_check_branch
    %22 = sbr.rel (0) target = $region17
  $region16: #{additional_layer_forward.1} parent=0 // pred_region
    _
  $region17: #{additional_layer_forward.1} parent=0 // pred_fallthru
    _

</llo_original>
